<compile_context>
chip_gen: v5e
topology: v5e:2x2
jax: 0.10.0
libtpu: 0.0.40
codegen_flags: <defaults>
</compile_context>

<pallas_src>
import math

import jax
import jax.numpy as jnp
from jax.experimental import pallas as pl
from jax.experimental.pallas import tpu as pltpu


MXU_DTYPE = jnp.bfloat16   # jnp.float32 -> exact numerical parity with the PyTorch reference


def _mxu_dot(a, b):
    """MXU matmul with bf16 operands (per perf review) and f32 accumulation."""
    return jnp.dot(a.astype(MXU_DTYPE), b.astype(MXU_DTYPE),
                   preferred_element_type=jnp.float32)


def heat_layer_kernel(c_edge_ref,   # SMEM  [Ed]               folded per-edge-feature logit vector
                      prm_ref,      # VMEM  [3*F_in+3+Ed, F]   packed parameter slab (shared)
                      h_ref,        # VMEM  [N, F_in]          node features of this graph
                      spec_ref,     # VMEM  [2N+1, N]          [U ; U^T ; lambda] of this graph
                      e_ref,        # VMEM  [Ed, N(dst), N(src)] edge features of this graph
                      out_ref):     # VMEM  [N, F]
    n, f_in = h_ref.shape
    ed = e_ref.shape[0]

    # Static slices of the packed slabs (free views; offsets of the big chunks are 8-aligned).
    wfc   = prm_ref[0:f_in, :]                       # fc.weight.T                    [F_in, F]
    wk2d  = prm_ref[f_in:3 * f_in, :]                # self.weight reshaped           [2*F_in, F]
    a_src = prm_ref[3 * f_in:3 * f_in + 1, :]        # attn_fc cols for src z         [1, F]
    a_dst = prm_ref[3 * f_in + 1:3 * f_in + 2, :]    # attn_fc cols for dst z         [1, F]
    bias  = prm_ref[3 * f_in + 2:3 * f_in + 3, :]    # self.bias                      [1, F]
    u     = spec_ref[0:n, :]                         # eigenvectors U                 [N, N]
    ut    = spec_ref[n:2 * n, :]                     # U^T                            [N, N]
    lamb  = spec_ref[2 * n:2 * n + 1, :]             # eigenvalues                    [1, N]

    # ---------------- node heat-wavelet part ----------------
    z0 = _mxu_dot(h_ref[...], wfc)                                   # z = fc(h)          [N, F]
    # w[1] @ z0 = U diag(e^{-2 lambda}) U^T z0, applied re-associated (no NxN weight matrix)
    explamb = jnp.exp(-2.0 * lamb)                                   # [1, N]
    t1 = _mxu_dot(ut, z0)                                            # U^T z0             [N, F]
    z1 = _mxu_dot(u * explamb, t1)                                   # [N, F]
    # result @ self.weight: both K terms merged into one K=2*F_in matmul, then sum + bias
    z = _mxu_dot(jnp.concatenate([z0, z1], axis=-1), wk2d) + bias    # [N, F]

    # -------- batched edge attention: logits laid out [dst (sublane), src (lane)] --------
    # s_src along lanes via a tiny MXU dot; s_dst along sublanes via VPU mul + XLU lane-reduce
    # (review's single-matmul + [N,1]->[1,N] transpose variant avoided: transpose lowering risk).
    s_src_row = jax.lax.dot_general(a_src.astype(MXU_DTYPE), z.astype(MXU_DTYPE),
                                    (((1,), (1,)), ((), ())),
                                    preferred_element_type=jnp.float32)      # [1, N]
    s_dst_col = jnp.sum(z * a_dst, axis=-1, keepdims=True)                   # [N, 1]
    # per-edge scalar term: fc_edge_for_att_calc / fc_edge / attn_edge / a_e folded into c_edge
    t_edge = e_ref[0] * c_edge_ref[0]
    for d in range(1, ed):
        t_edge = t_edge + e_ref[d] * c_edge_ref[d]                           # [N, N]

    logits = s_src_row + s_dst_col + t_edge
    logits = jnp.where(logits > 0, logits, 0.01 * logits)                    # leaky_relu (torch default)
    # softmax over incoming edges (src = lane axis); exact divide for reference parity
    m = jnp.max(logits, axis=-1, keepdims=True)
    p = jnp.exp(logits - m)
    attn = p / jnp.sum(p, axis=-1, keepdims=True)                            # [N, N]

    # ---------------- weighted aggregation ----------------
    hv = _mxu_dot(attn, z)                                                   # sum_u attn * z_u   [N, F]
    for d in range(ed):
        e_red = jnp.sum(attn * e_ref[d], axis=-1, keepdims=True)             # [N, 1]
        hv = hv + e_red * prm_ref[3 * f_in + 3 + d:3 * f_in + 4 + d, :]      # + sum_u attn * ez
    out_ref[...] = hv.astype(out_ref.dtype)


def heat_layer_forward_batched(h, e, adj, params):
    """HeatLayer forward applied to a batch of G dense graphs.

    h:   [G, N, F_in]   node features
    e:   [G, N*N, Ed]   edge features, dst-major (row v*N + u = feature of edge u -> v)
    adj: [G, N, N]      symmetric adjacency without self loops
    """
    G, N, F_in = h.shape
    F = params["wfc_t"].shape[1]
    Ed = e.shape[-1]
    # result @ self.weight requires nfeats_in_dim == nfeats_out_dim (as in the PyTorch usage)
    assert F_in == F, "HeatLayer requires nfeats_in_dim == nfeats_out_dim"

    # --- glue: normalized Laplacian + eigendecomposition (heat_weight) ---
    # TODO(synk): torch.linalg.eigh has no Pallas equivalent; XLA's batched eigh is used here.
    deg = jnp.sum(adj, axis=-1)
    dinv = deg ** (-0.5)                                    # matches torch (no clamp; inf if isolated)
    lap = (jnp.eye(N, dtype=jnp.float32)[None]
           - dinv[:, :, None] * adj * dinv[:, None, :])     # [G, N, N]
    lamb, u_mat = jnp.linalg.eigh(lap)                      # ascending already; reference sort is a no-op
    # per-graph spectral slab [U ; U^T ; lambda] -> a single VMEM DMA per graph
    spec = jnp.concatenate(
        [u_mat, jnp.swapaxes(u_mat, -1, -2), lamb[:, None, :]], axis=1
    ).astype(jnp.float32)                                   # [G, 2N+1, N]

    # --- parameter-only folds (exact: no nonlinearity sits between the folded linears) ---
    # logit edge term: ex.a_e + fc_edge(ex).attn_edge  with ex = fc_edge_for_att_calc(e)
    #                = e @ (wea_t @ (wfe_t @ attn_edge^T + a_e^T))
    v = params["wfe_t"] @ params["attn_edge_row"].T + params["a_e_row"].T     # [Ed, 1]
    c_edge = (params["wea_t"] @ v).reshape(Ed).astype(jnp.float32)            # [Ed]
    # ez = fc_eFeatsDim_to_nFeatsDim(ex) = e @ (wea_t @ wez_t)
    wez_eff = (params["wea_t"] @ params["wez_t"]).astype(jnp.float32)         # [Ed, F]
    wk2d = params["wk"].reshape(2 * F_in, F)                                  # [2*F_in, F]
    # one packed parameter slab, shared by all graphs (one DMA, stays VMEM-resident)
    prm = jnp.concatenate(
        [params["wfc_t"], wk2d, params["a_src_row"], params["a_dst_row"],
         params["bias"], wez_eff], axis=0).astype(jnp.float32)                # [3*F_in+3+Ed, F]

    # layout plumbing: edge features -> [G, Ed, dst, src], src on the lane axis
    e_t = e.reshape(G, N, N, Ed).transpose(0, 3, 1, 2).astype(jnp.float32)

    flops_per_graph = 2 * (N * F_in * F + 2 * N * N * F + N * (2 * F_in) * F
                           + N * N * F + N * F) + 10 * N * N
    cost = pl.CostEstimate(
        flops=int(G * flops_per_graph),
        transcendentals=int(G * (N * N + N)),
        bytes_accessed=int(4 * (prm.size + c_edge.size + h.size + spec.size
                                + e_t.size + G * N * F)),
    )

    grid_spec = pltpu.PrefetchScalarGridSpec(
        num_scalar_prefetch=1,                                        # c_edge -> SMEM
        grid=(G,),                                                    # one program per graph
        in_specs=[
            pl.BlockSpec(prm.shape, lambda g, c: (0, 0)),             # shared params, resident
            pl.BlockSpec((None, N, F_in), lambda g, c: (g, 0, 0)),    # h of graph g
            pl.BlockSpec((None, 2 * N + 1, N), lambda g, c: (g, 0, 0)),   # spectral slab of g
            pl.BlockSpec((None, Ed, N, N), lambda g, c: (g, 0, 0, 0)),    # edge features of g
        ],
        out_specs=pl.BlockSpec((None, N, F), lambda g, c: (g, 0, 0)),
    )
    # NOTE: VMEM footprint here is <1 MiB.  If N grows past ~1-2k, tile the dst axis with an
    # extra grid dim and set vmem_limit_bytes explicitly (v7x has only 64 MiB of VMEM).
    out = pl.pallas_call(
        heat_layer_kernel,
        out_shape=jax.ShapeDtypeStruct((G, N, F), jnp.float32),
        grid_spec=grid_spec,
        compiler_params=pltpu.CompilerParams(dimension_semantics=("parallel",)),
        cost_estimate=cost,
    )(c_edge, prm, h.astype(jnp.float32), spec, e_t)
    return out


def heat_layer_forward(h, e, adj, params):
    """Single-graph forward, matching HeatLayer.forward(g, h, e, adj)."""
    return heat_layer_forward_batched(h[None], e[None], adj[None], params)[0]


if __name__ == "__main__":
    G = 2       # batch of graphs (grid axis, "parallel" -> both TCs on v7x)
    N = 16      # nodes per graph
    F_IN = 32   # nfeats_in_dim (== nfeats_out_dim, required by the matmul with self.weight)
    F_OUT = 32  # nfeats_out_dim
    ED = 2      # edge_dim

    key = jax.random.PRNGKey(0)
    ks = jax.random.split(key, 12)
    gain = math.sqrt(2.0)  # nn.init.calculate_gain('relu')

    def xn(k, shape, fan_in, fan_out, g=gain):
        std = g * math.sqrt(2.0 / (fan_in + fan_out))
        return (std * jax.random.normal(k, shape)).astype(jnp.float32)

    # PyTorch nn.Linear stores weight as [out, in]; the kernel consumes the [in, out] transpose.
    w_fc = xn(ks[0], (F_OUT, F_IN), F_IN, F_OUT)                 # fc
    w_attn = xn(ks[1], (1, 2 * F_OUT + ED), 2 * F_OUT + ED, 1)   # attn_fc
    w_ea = xn(ks[2], (ED, ED), ED, ED)                           # fc_edge_for_att_calc
    w_ez = xn(ks[3], (F_OUT, ED), ED, F_OUT)                     # fc_eFeatsDim_to_nFeatsDim
    w_fe = xn(ks[4], (F_OUT, ED), ED, F_OUT)                     # fc_edge
    attn_edge = xn(ks[5], (1, 1, F_OUT), F_OUT, F_OUT)           # attn_edge param
    w_k = xn(ks[6], (2, F_IN, F_OUT), F_IN, F_OUT, g=1.0)        # self.weight (xavier_normal_)
    bias = jnp.zeros((1, F_OUT), jnp.float32)                    # self.bias

    h = jax.random.normal(ks[7], (G, N, F_IN), jnp.float32)
    # edge features, flattened dst-major: e[g, v*N + u] is the feature of edge u -> v
    e = jax.random.normal(ks[8], (G, N * N, ED), jnp.float32)
    r = jax.random.uniform(ks[9], (G, N, N), jnp.float32, 0.1, 1.0)
    adj = (r + jnp.swapaxes(r, -1, -2)) * 0.5 * (1.0 - jnp.eye(N, dtype=jnp.float32))  # no self loops

    params = dict(
        wfc_t=w_fc.T,
        wk=w_k,
        bias=bias,
        wea_t=w_ea.T,
        wfe_t=w_fe.T,
        wez_t=w_ez.T,
        attn_edge_row=attn_edge.reshape(1, F_OUT),
        # attn_fc input is cat([src z, dst z, ex]) -> this column split matches that order
        a_src_row=w_attn[:, :F_OUT],
        a_dst_row=w_attn[:, F_OUT:2 * F_OUT],
        a_e_row=w_attn[:, 2 * F_OUT:],
    )

    out = heat_layer_forward_batched(h, e, adj, params)
    jax.block_until_ready(out)
    assert out.shape == (G, N, F_OUT)
    print("KERNEL_OK")
</pallas_src>

<mosaic_0001>
module attributes {stable_mosaic.version = 11 : i64} {
  func.func @heat_layer_kernel(%arg0: i32, %arg1: memref<2xf32, #tpu.memory_space<smem>>, %arg2: memref<101x32xf32, #tpu.memory_space<vmem>>, %arg3: memref<1x16x32xf32, #tpu.memory_space<vmem>>, %arg4: memref<1x33x16xf32, #tpu.memory_space<vmem>>, %arg5: memref<1x2x16x16xf32, #tpu.memory_space<vmem>>, %arg6: memref<1x16x32xf32, #tpu.memory_space<vmem>>) attributes {dimension_semantics = [#tpu.dimension_semantics<parallel>], iteration_bounds = array<i64: 2>, scalar_prefetch = 1 : i64, scratch_operands = 0 : i64, tpu.core_type = #tpu.core_type<tc>, window_params = [{pipeline_mode = #tpu.pipeline_mode<synchronous>, transform_indices = @transform_0, window_bounds = array<i64: 101, 32>}, {transform_indices = @transform_1, window_bounds = array<i64: 1, 16, 32>}, {transform_indices = @transform_2, window_bounds = array<i64: 1, 33, 16>}, {transform_indices = @transform_3, window_bounds = array<i64: 1, 2, 16, 16>}, {transform_indices = @transform_4, window_bounds = array<i64: 1, 16, 32>}]} {
    %c0 = arith.constant 0 : index
    %c0_0 = arith.constant 0 : index
    %0 = vector.load %arg2[%c0, %c0_0] : memref<101x32xf32, #tpu.memory_space<vmem>>, vector<32x32xf32>
    %c32 = arith.constant 32 : index
    %c0_1 = arith.constant 0 : index
    %1 = vector.load %arg2[%c32, %c0_1] : memref<101x32xf32, #tpu.memory_space<vmem>>, vector<64x32xf32>
    %c96 = arith.constant 96 : index
    %c0_2 = arith.constant 0 : index
    %2 = vector.load %arg2[%c96, %c0_2] : memref<101x32xf32, #tpu.memory_space<vmem>>, vector<1x32xf32>
    %c97 = arith.constant 97 : index
    %c0_3 = arith.constant 0 : index
    %3 = vector.load %arg2[%c97, %c0_3] : memref<101x32xf32, #tpu.memory_space<vmem>>, vector<1x32xf32>
    %c98 = arith.constant 98 : index
    %c0_4 = arith.constant 0 : index
    %4 = vector.load %arg2[%c98, %c0_4] : memref<101x32xf32, #tpu.memory_space<vmem>>, vector<1x32xf32>
    %c0_5 = arith.constant 0 : index
    %c0_6 = arith.constant 0 : index
    %c0_7 = arith.constant 0 : index
    %5 = vector.load %arg4[%c0_5, %c0_6, %c0_7] : memref<1x33x16xf32, #tpu.memory_space<vmem>>, vector<1x16x16xf32>
    %6 = vector.shape_cast %5 : vector<1x16x16xf32> to vector<16x16xf32>
    %c0_8 = arith.constant 0 : index
    %c16 = arith.constant 16 : index
    %c0_9 = arith.constant 0 : index
    %7 = vector.load %arg4[%c0_8, %c16, %c0_9] : memref<1x33x16xf32, #tpu.memory_space<vmem>>, vector<1x16x16xf32>
    %8 = vector.shape_cast %7 : vector<1x16x16xf32> to vector<16x16xf32>
    %c0_10 = arith.constant 0 : index
    %c32_11 = arith.constant 32 : index
    %c0_12 = arith.constant 0 : index
    %9 = vector.load %arg4[%c0_10, %c32_11, %c0_12] : memref<1x33x16xf32, #tpu.memory_space<vmem>>, vector<1x1x16xf32>
    %10 = vector.shape_cast %9 : vector<1x1x16xf32> to vector<1x16xf32>
    %c0_13 = arith.constant 0 : index
    %c0_14 = arith.constant 0 : index
    %c0_15 = arith.constant 0 : index
    %11 = vector.load %arg3[%c0_13, %c0_14, %c0_15] : memref<1x16x32xf32, #tpu.memory_space<vmem>>, vector<1x16x32xf32>
    %12 = vector.shape_cast %11 : vector<1x16x32xf32> to vector<16x32xf32>
    %13 = arith.truncf %12 : vector<16x32xf32> to vector<16x32xbf16>
    %14 = arith.truncf %0 : vector<32x32xf32> to vector<32x32xbf16>
    %cst = arith.constant dense<0.000000e+00> : vector<16x32xf32>
    %15 = tpu.matmul %13, %14, %cst {dimension_numbers = #tpu.dot_dimension_numbers<[1], [0], [0], [1], [0, 0, 1, 1], [], []>} : vector<16x32xbf16>, vector<32x32xbf16>, vector<16x32xf32> -> vector<16x32xf32>
    %cst_16 = arith.constant -2.000000e+00 : f32
    %16 = vector.broadcast %cst_16 : f32 to vector<1x16xf32>
    %17 = arith.mulf %16, %10 : vector<1x16xf32>
    %18 = math.exp %17 : vector<1x16xf32>
    %19 = arith.truncf %8 : vector<16x16xf32> to vector<16x16xbf16>
    %20 = arith.truncf %15 : vector<16x32xf32> to vector<16x32xbf16>
    %cst_17 = arith.constant dense<0.000000e+00> : vector<16x32xf32>
    %21 = tpu.matmul %19, %20, %cst_17 {dimension_numbers = #tpu.dot_dimension_numbers<[1], [0], [0], [1], [0, 0, 1, 1], [], []>} : vector<16x16xbf16>, vector<16x32xbf16>, vector<16x32xf32> -> vector<16x32xf32>
    %22 = vector.broadcast %18 : vector<1x16xf32> to vector<16x16xf32>
    %23 = arith.mulf %6, %22 : vector<16x16xf32>
    %24 = arith.truncf %23 : vector<16x16xf32> to vector<16x16xbf16>
    %25 = arith.truncf %21 : vector<16x32xf32> to vector<16x32xbf16>
    %cst_18 = arith.constant dense<0.000000e+00> : vector<16x32xf32>
    %26 = tpu.matmul %24, %25, %cst_18 {dimension_numbers = #tpu.dot_dimension_numbers<[1], [0], [0], [1], [0, 0, 1, 1], [], []>} : vector<16x16xbf16>, vector<16x32xbf16>, vector<16x32xf32> -> vector<16x32xf32>
    %27 = tpu.concatenate %15, %26 in 1 : vector<16x32xf32>, vector<16x32xf32> -> vector<16x64xf32>
    %28 = arith.truncf %27 : vector<16x64xf32> to vector<16x64xbf16>
    %29 = arith.truncf %1 : vector<64x32xf32> to vector<64x32xbf16>
    %cst_19 = arith.constant dense<0.000000e+00> : vector<16x32xf32>
    %30 = tpu.matmul %28, %29, %cst_19 {dimension_numbers = #tpu.dot_dimension_numbers<[1], [0], [0], [1], [0, 0, 1, 1], [], []>} : vector<16x64xbf16>, vector<64x32xbf16>, vector<16x32xf32> -> vector<16x32xf32>
    %31 = vector.broadcast %4 : vector<1x32xf32> to vector<16x32xf32>
    %32 = arith.addf %30, %31 : vector<16x32xf32>
    %33 = arith.truncf %2 : vector<1x32xf32> to vector<1x32xbf16>
    %34 = arith.truncf %32 : vector<16x32xf32> to vector<16x32xbf16>
    %cst_20 = arith.constant dense<0.000000e+00> : vector<1x16xf32>
    %35 = tpu.matmul %33, %34, %cst_20 {dimension_numbers = #tpu.dot_dimension_numbers<[1], [1], [0], [0], [0, 0, 1, 0], [], []>} : vector<1x32xbf16>, vector<16x32xbf16>, vector<1x16xf32> -> vector<1x16xf32>
    %36 = vector.broadcast %3 : vector<1x32xf32> to vector<16x32xf32>
    %37 = arith.mulf %32, %36 : vector<16x32xf32>
    %cst_21 = arith.constant dense<0.000000e+00> : vector<16xf32>
    %38 = vector.multi_reduction <add>, %37, %cst_21 [1] : vector<16x32xf32> to vector<16xf32>
    %39 = vector.shape_cast %38 : vector<16xf32> to vector<16x1xf32>
    %c0_22 = arith.constant 0 : index
    %c0_23 = arith.constant 0 : index
    %c0_24 = arith.constant 0 : index
    %c0_25 = arith.constant 0 : index
    %40 = vector.load %arg5[%c0_22, %c0_23, %c0_24, %c0_25] : memref<1x2x16x16xf32, #tpu.memory_space<vmem>>, vector<1x1x16x16xf32>
    %41 = vector.shape_cast %40 : vector<1x1x16x16xf32> to vector<16x16xf32>
    %c0_26 = arith.constant 0 : index
    %42 = memref.load %arg1[%c0_26] : memref<2xf32, #tpu.memory_space<smem>>
    %43 = vector.broadcast %42 : f32 to vector<16x16xf32>
    %44 = arith.mulf %41, %43 : vector<16x16xf32>
    %c0_27 = arith.constant 0 : index
    %c1 = arith.constant 1 : index
    %c0_28 = arith.constant 0 : index
    %c0_29 = arith.constant 0 : index
    %45 = vector.load %arg5[%c0_27, %c1, %c0_28, %c0_29] : memref<1x2x16x16xf32, #tpu.memory_space<vmem>>, vector<1x1x16x16xf32>
    %46 = vector.shape_cast %45 : vector<1x1x16x16xf32> to vector<16x16xf32>
    %c1_30 = arith.constant 1 : index
    %47 = memref.load %arg1[%c1_30] : memref<2xf32, #tpu.memory_space<smem>>
    %48 = vector.broadcast %47 : f32 to vector<16x16xf32>
    %49 = arith.mulf %46, %48 : vector<16x16xf32>
    %50 = arith.addf %44, %49 : vector<16x16xf32>
    %51 = vector.broadcast %35 : vector<1x16xf32> to vector<16x16xf32>
    %52 = vector.broadcast %39 : vector<16x1xf32> to vector<16x16xf32>
    %53 = arith.addf %51, %52 : vector<16x16xf32>
    %54 = arith.addf %53, %50 : vector<16x16xf32>
    %cst_31 = arith.constant 0.000000e+00 : f32
    %55 = vector.broadcast %cst_31 : f32 to vector<16x16xf32>
    %56 = arith.cmpf ogt, %54, %55 : vector<16x16xf32>
    %cst_32 = arith.constant 0.00999999977 : f32
    %57 = vector.broadcast %cst_32 : f32 to vector<16x16xf32>
    %58 = arith.mulf %57, %54 : vector<16x16xf32>
    %59 = arith.select %56, %54, %58 : vector<16x16xi1>, vector<16x16xf32>
    %cst_33 = arith.constant dense<0xFF800000> : vector<16xf32>
    %60 = vector.multi_reduction <maximumf>, %59, %cst_33 [1] : vector<16x16xf32> to vector<16xf32>
    %61 = vector.shape_cast %60 : vector<16xf32> to vector<16x1xf32>
    %62 = vector.broadcast %61 : vector<16x1xf32> to vector<16x16xf32>
    %63 = arith.subf %59, %62 : vector<16x16xf32>
    %64 = math.exp %63 : vector<16x16xf32>
    %cst_34 = arith.constant dense<0.000000e+00> : vector<16xf32>
    %65 = vector.multi_reduction <add>, %64, %cst_34 [1] : vector<16x16xf32> to vector<16xf32>
    %66 = vector.shape_cast %65 : vector<16xf32> to vector<16x1xf32>
    %67 = vector.broadcast %66 : vector<16x1xf32> to vector<16x16xf32>
    %68 = arith.divf %64, %67 : vector<16x16xf32>
    %69 = arith.truncf %68 : vector<16x16xf32> to vector<16x16xbf16>
    %70 = arith.truncf %32 : vector<16x32xf32> to vector<16x32xbf16>
    %cst_35 = arith.constant dense<0.000000e+00> : vector<16x32xf32>
    %71 = tpu.matmul %69, %70, %cst_35 {dimension_numbers = #tpu.dot_dimension_numbers<[1], [0], [0], [1], [0, 0, 1, 1], [], []>} : vector<16x16xbf16>, vector<16x32xbf16>, vector<16x32xf32> -> vector<16x32xf32>
    %c0_36 = arith.constant 0 : index
    %c0_37 = arith.constant 0 : index
    %c0_38 = arith.constant 0 : index
    %c0_39 = arith.constant 0 : index
    %72 = vector.load %arg5[%c0_36, %c0_37, %c0_38, %c0_39] : memref<1x2x16x16xf32, #tpu.memory_space<vmem>>, vector<1x1x16x16xf32>
    %73 = vector.shape_cast %72 : vector<1x1x16x16xf32> to vector<16x16xf32>
    %74 = arith.mulf %68, %73 : vector<16x16xf32>
    %cst_40 = arith.constant dense<0.000000e+00> : vector<16xf32>
    %75 = vector.multi_reduction <add>, %74, %cst_40 [1] : vector<16x16xf32> to vector<16xf32>
    %76 = vector.shape_cast %75 : vector<16xf32> to vector<16x1xf32>
    %c99 = arith.constant 99 : index
    %c0_41 = arith.constant 0 : index
    %77 = vector.load %arg2[%c99, %c0_41] : memref<101x32xf32, #tpu.memory_space<vmem>>, vector<1x32xf32>
    %78 = vector.broadcast %76 : vector<16x1xf32> to vector<16x32xf32>
    %79 = vector.broadcast %77 : vector<1x32xf32> to vector<16x32xf32>
    %80 = arith.mulf %78, %79 : vector<16x32xf32>
    %81 = arith.addf %71, %80 : vector<16x32xf32>
    %c0_42 = arith.constant 0 : index
    %c1_43 = arith.constant 1 : index
    %c0_44 = arith.constant 0 : index
    %c0_45 = arith.constant 0 : index
    %82 = vector.load %arg5[%c0_42, %c1_43, %c0_44, %c0_45] : memref<1x2x16x16xf32, #tpu.memory_space<vmem>>, vector<1x1x16x16xf32>
    %83 = vector.shape_cast %82 : vector<1x1x16x16xf32> to vector<16x16xf32>
    %84 = arith.mulf %68, %83 : vector<16x16xf32>
    %cst_46 = arith.constant dense<0.000000e+00> : vector<16xf32>
    %85 = vector.multi_reduction <add>, %84, %cst_46 [1] : vector<16x16xf32> to vector<16xf32>
    %86 = vector.shape_cast %85 : vector<16xf32> to vector<16x1xf32>
    %c100 = arith.constant 100 : index
    %c0_47 = arith.constant 0 : index
    %87 = vector.load %arg2[%c100, %c0_47] : memref<101x32xf32, #tpu.memory_space<vmem>>, vector<1x32xf32>
    %88 = vector.broadcast %86 : vector<16x1xf32> to vector<16x32xf32>
    %89 = vector.broadcast %87 : vector<1x32xf32> to vector<16x32xf32>
    %90 = arith.mulf %88, %89 : vector<16x32xf32>
    %91 = arith.addf %81, %90 : vector<16x32xf32>
    %c0_48 = arith.constant 0 : index
    %c0_49 = arith.constant 0 : index
    %c0_50 = arith.constant 0 : index
    %92 = vector.load %arg6[%c0_48, %c0_49, %c0_50] : memref<1x16x32xf32, #tpu.memory_space<vmem>>, vector<1x16x32xf32>
    %93 = vector.shape_cast %92 : vector<1x16x32xf32> to vector<16x32xf32>
    %94 = vector.shape_cast %91 : vector<16x32xf32> to vector<1x16x32xf32>
    tpu.vector_store %arg6[%c0_48, %c0_49, %c0_50], %94 {strides = array<i32>} : memref<1x16x32xf32, #tpu.memory_space<vmem>>, vector<1x16x32xf32>,
    return
  }
  func.func @transform_0(%arg0: i32, %arg1: memref<2xf32, #tpu.memory_space<smem>>) -> (i32, i32) {
    %c0_i32 = arith.constant 0 : i32
    %c0_i32_0 = arith.constant 0 : i32
    %c0_i32_1 = arith.constant 0 : i32
    return %c0_i32, %c0_i32_0 : i32, i32
  }
  func.func @transform_1(%arg0: i32, %arg1: memref<2xf32, #tpu.memory_space<smem>>) -> (i32, i32, i32) {
    %c0_i32 = arith.constant 0 : i32
    %c0_i32_0 = arith.constant 0 : i32
    %c0_i32_1 = arith.constant 0 : i32
    return %arg0, %c0_i32, %c0_i32_0 : i32, i32, i32
  }
  func.func @transform_2(%arg0: i32, %arg1: memref<2xf32, #tpu.memory_space<smem>>) -> (i32, i32, i32) {
    %c0_i32 = arith.constant 0 : i32
    %c0_i32_0 = arith.constant 0 : i32
    %c0_i32_1 = arith.constant 0 : i32
    return %arg0, %c0_i32, %c0_i32_0 : i32, i32, i32
  }
  func.func @transform_3(%arg0: i32, %arg1: memref<2xf32, #tpu.memory_space<smem>>) -> (i32, i32, i32, i32) {
    %c0_i32 = arith.constant 0 : i32
    %c0_i32_0 = arith.constant 0 : i32
    %c0_i32_1 = arith.constant 0 : i32
    %c0_i32_2 = arith.constant 0 : i32
    return %arg0, %c0_i32, %c0_i32_0, %c0_i32_1 : i32, i32, i32, i32
  }
  func.func @transform_4(%arg0: i32, %arg1: memref<2xf32, #tpu.memory_space<smem>>) -> (i32, i32, i32) {
    %c0_i32 = arith.constant 0 : i32
    %c0_i32_0 = arith.constant 0 : i32
    %c0_i32_1 = arith.constant 0 : i32
    return %arg0, %c0_i32, %c0_i32_0 : i32, i32, i32
  }
}

</mosaic_0001>

<llo_original>
// kernel: tpu_custom_call.1
$region0: #{tpu_custom_call.1}
  #allocation0 [shape = 'u32[]', space=smem, size = 0x4, offset = 0x4, fixed_abs, tag = 'smem constant byte address 0x4 - core index']
  #allocation1 [shape = 'u32[72,128]{1,0:T(1,128)}', space=vmem, size = 0x9000, scoped, tag = 'internal scratch']
  #allocation2 [shape = 's32[1]{0}', space=sflag, size = 0x4, scoped, tag = 'scoped memory for tpu_custom_call.1']
  #allocation3 [shape = 'u8[512]{0}', space=smem, size = 0x200, scoped, tag = 'prefetched SMEM operand 0']
  %s0 = inlined_call_operand.vmem [shape: f32[2], index: 0, kind: input, shape index: {}]
  %s1 = inlined_call_operand.vmem [shape: f32[101,32], index: 1, kind: input, shape index: {}]
  %s2 = inlined_call_operand.vmem [shape: f32[2,16,32], index: 2, kind: input, shape index: {}]
  %s3 = inlined_call_operand.vmem [shape: f32[2,33,16], index: 3, kind: input, shape index: {}]
  %s4 = inlined_call_operand.vmem [shape: f32[2,2,16,16], index: 4, kind: input, shape index: {}]
  %s5 = inlined_call_operand.hbm [shape: f32[2,16,32], index: 5, kind: output, shape index: {}]
  %s6 = sld [smem:[#allocation0]]
  $region49: #{tpu_custom_call.1} parent=0
    _
  %s8 = ssub.s32 1, %s6
  %s9 = scalar_select 0, %s8, %s6
  %s11 = sshll.u32 %s0, 4
  %s12 = int_to_ptr.vmem [resolvable:$true] %s11
  %14 = dma.vmem_to_smem %s12, 16, [#allocation3], [#allocation2]
  %16 = dma.done [#allocation2], 16
  %17 = sfence
  $region1: #{tpu_custom_call.1} parent=0
    #allocation4 [shape = 'u8[16384]{0}', space=vmem, size = 0x4000, scoped, tag = 'output window, operand 0']
    #allocation5 [shape = 's32[2]{0}', space=sflag, size = 0x8, scoped, tag = 'scoped memory for tpu_custom_call.1']
    %18 = vsyncpa [#allocation5], 0
    %s19 = scalar_lea.sflag [#allocation5], 1
    %20 = vsyncpa %s19, 0
    loop: start=0, step=1, limit=4
    $region2: #{tpu_custom_call.1} parent=1 // loop_pre_header
      _
    $region3: #{tpu_custom_call.1} parent=1 // loop_header
      %s22 = sphi 0, %s26
      %p23 = scmp.ge.s32.totalorder %s22, 4
      %s30 = sphi 0, %s30
      %s32 = sphi 0, %s30
      %s33 = sphi 0, %s32
      %s47 = sphi 0, %s33
      %s53 = sphi 0, %s55
      %s56 = sphi 0, %s53
      %s57 = sphi 0, %s56
      %s73 = sphi 0, %s57
      %s79 = sphi 0, %s81
      %s82 = sphi 0, %s79
      %s83 = sphi 0, %s82
      %s99 = sphi 0, %s83
      %s105 = sphi 0, %s107
      %s108 = sphi 0, %s105
      %s109 = sphi 0, %s108
      %s125 = sphi 0, %s109
      %s131 = sphi 0, %s133
      %s134 = sphi 0, %s131
      %s135 = sphi 0, %s134
      %s151 = sphi 0, %s135
    $region4: #{tpu_custom_call.1} parent=1 // loop_header_branch
      %25 = sbr.rel (%p23) target = $region8
    $region5: #{tpu_custom_call.1} parent=1 // loop_body
      %s27 = ssub.s32 %s22, 1
      %s28 = ssub.s32 %s22, 2
      %s29 = sadd.s32 %s22, 1
      %s31 = sadd.s32 %s30, 1
      %p34 = scmp.eq.s32.totalorder %s22, 1
      %p35 = scmp.ne.s32.totalorder %s30, %s32
      %p36 = scmp.eq.s32.totalorder %s22, 0
      %p37 = por %p35, %p36
      %p38 = scmp.ne.s32.totalorder %s30, %s32
      %p39 = scmp.eq.s32.totalorder %s27, 1
      %p40 = por %p38, %p39
      %p41 = scmp.ne.s32.totalorder %s32, %s33
      %p42 = scmp.eq.s32.totalorder %s27, 0
      %p43 = por %p41, %p42
      %p44 = scmp.ne.s32.totalorder %s32, %s33
      %p45 = scmp.eq.s32.totalorder %s28, 1
      %p46 = por %p44, %p45
      %p48 = scmp.ne.s32.totalorder %s33, %s47
      %p49 = scmp.eq.s32.totalorder %s28, 0
      %p50 = por %p48, %p49
      %s51 = ssub.s32 %s22, %s29
      %p52 = scmp.eq.s32.totalorder %s51, 0
      %s54 = sadd.s32 %s53, 1
      %s55 = scalar_select %p52, %s53, %s54
      %p58 = pneg %p52
      %p59 = scmp.eq.s32.totalorder %s22, 1
      %p60 = por %p58, %p59
      %p61 = scmp.ne.s32.totalorder %s53, %s56
      %p62 = scmp.eq.s32.totalorder %s22, 0
      %p63 = por %p61, %p62
      %p64 = scmp.ne.s32.totalorder %s53, %s56
      %p65 = scmp.eq.s32.totalorder %s27, 1
      %p66 = por %p64, %p65
      %p67 = scmp.ne.s32.totalorder %s56, %s57
      %p68 = scmp.eq.s32.totalorder %s27, 0
      %p69 = por %p67, %p68
      %p70 = scmp.ne.s32.totalorder %s56, %s57
      %p71 = scmp.eq.s32.totalorder %s28, 1
      %p72 = por %p70, %p71
      %p74 = scmp.ne.s32.totalorder %s57, %s73
      %p75 = scmp.eq.s32.totalorder %s28, 0
      %p76 = por %p74, %p75
      %s77 = ssub.s32 %s22, %s29
      %p78 = scmp.eq.s32.totalorder %s77, 0
      %s80 = sadd.s32 %s79, 1
      %s81 = scalar_select %p78, %s79, %s80
      %p84 = pneg %p78
      %p85 = scmp.eq.s32.totalorder %s22, 1
      %p86 = por %p84, %p85
      %p87 = scmp.ne.s32.totalorder %s79, %s82
      %p88 = scmp.eq.s32.totalorder %s22, 0
      %p89 = por %p87, %p88
      %p90 = scmp.ne.s32.totalorder %s79, %s82
      %p91 = scmp.eq.s32.totalorder %s27, 1
      %p92 = por %p90, %p91
      %p93 = scmp.ne.s32.totalorder %s82, %s83
      %p94 = scmp.eq.s32.totalorder %s27, 0
      %p95 = por %p93, %p94
      %p96 = scmp.ne.s32.totalorder %s82, %s83
      %p97 = scmp.eq.s32.totalorder %s28, 1
      %p98 = por %p96, %p97
      %p100 = scmp.ne.s32.totalorder %s83, %s99
      %p101 = scmp.eq.s32.totalorder %s28, 0
      %p102 = por %p100, %p101
      %s103 = ssub.s32 %s22, %s29
      %p104 = scmp.eq.s32.totalorder %s103, 0
      %s106 = sadd.s32 %s105, 1
      %s107 = scalar_select %p104, %s105, %s106
      %p110 = pneg %p104
      %p111 = scmp.eq.s32.totalorder %s22, 1
      %p112 = por %p110, %p111
      %p113 = scmp.ne.s32.totalorder %s105, %s108
      %p114 = scmp.eq.s32.totalorder %s22, 0
      %p115 = por %p113, %p114
      %p116 = scmp.ne.s32.totalorder %s105, %s108
      %p117 = scmp.eq.s32.totalorder %s27, 1
      %p118 = por %p116, %p117
      %p119 = scmp.ne.s32.totalorder %s108, %s109
      %p120 = scmp.eq.s32.totalorder %s27, 0
      %p121 = por %p119, %p120
      %p122 = scmp.ne.s32.totalorder %s108, %s109
      %p123 = scmp.eq.s32.totalorder %s28, 1
      %p124 = por %p122, %p123
      %p126 = scmp.ne.s32.totalorder %s109, %s125
      %p127 = scmp.eq.s32.totalorder %s28, 0
      %p128 = por %p126, %p127
      %s129 = ssub.s32 %s22, %s29
      %p130 = scmp.eq.s32.totalorder %s129, 0
      %s132 = sadd.s32 %s131, 1
      %s133 = scalar_select %p130, %s131, %s132
      %p136 = pneg %p130
      %p137 = scmp.eq.s32.totalorder %s22, 1
      %p138 = por %p136, %p137
      %p139 = scmp.ne.s32.totalorder %s131, %s134
      %p140 = scmp.eq.s32.totalorder %s22, 0
      %p141 = por %p139, %p140
      %p142 = scmp.ne.s32.totalorder %s131, %s134
      %p143 = scmp.eq.s32.totalorder %s27, 1
      %p144 = por %p142, %p143
      %p145 = scmp.ne.s32.totalorder %s134, %s135
      %p146 = scmp.eq.s32.totalorder %s27, 0
      %p147 = por %p145, %p146
      %p148 = scmp.ne.s32.totalorder %s134, %s135
      %p149 = scmp.eq.s32.totalorder %s28, 1
      %p150 = por %p148, %p149
      %p152 = scmp.ne.s32.totalorder %s135, %s151
      %p153 = scmp.eq.s32.totalorder %s28, 0
      %p154 = por %p152, %p153
      %p155 = scmp.le.s32.totalorder 1, %s22
      %p156 = scmp.lt.s32.totalorder %s22, 3
      %p157 = pnand %p155, %p156
      %p158 = pneg %p157
      // Predicated region
      $region9: #{tpu_custom_call.1} parent=5 // pred_check
        _
      $region10: #{tpu_custom_call.1} parent=5 // pred_check_branch
        %160 = sbr.rel (%p157) target = $region12
      $region11: #{tpu_custom_call.1} parent=5 // pred_region
        %s161 = ssub.s32 %s22, 1
        // Predicated region
        $region13: #{tpu_custom_call.1} parent=11 // pred_check
          %p162 = pneg %p43
        $region14: #{tpu_custom_call.1} parent=11 // pred_check_branch
          %164 = sbr.rel (%p162) target = $region16
        $region15: #{tpu_custom_call.1} parent=11 // pred_region
          _
        $region16: #{tpu_custom_call.1} parent=11 // pred_fallthru
          _
      $region12: #{tpu_custom_call.1} parent=5 // pred_fallthru
        _
      %p165 = scmp.lt.s32.totalorder %s22, 2
      // Predicated region
      $region17: #{tpu_custom_call.1} parent=5 // pred_check
        %p166 = pneg %p165
      $region18: #{tpu_custom_call.1} parent=5 // pred_check_branch
        %168 = sbr.rel (%p166) target = $region20
      $region19: #{tpu_custom_call.1} parent=5 // pred_region
        // Predicated region
        $region21: #{tpu_custom_call.1} parent=19 // pred_check
          %p169 = pneg %p63
        $region22: #{tpu_custom_call.1} parent=19 // pred_check_branch
          %171 = sbr.rel (%p169) target = $region24
        $region23: #{tpu_custom_call.1} parent=19 // pred_region
          %p172 = scmp.lt.s32.totalorder %s22, 1
          %s173 = scalar_select %p172, %s22, 1
          %s174 = smul.addr %s173, 2
          %s175 = smul.addr %s174, 8
          %s176 = scalar_lea.vmem %s2, %s175
        $region24: #{tpu_custom_call.1} parent=19 // pred_fallthru
          _
        // Predicated region
        $region25: #{tpu_custom_call.1} parent=19 // pred_check
          %p177 = pneg %p89
        $region26: #{tpu_custom_call.1} parent=19 // pred_check_branch
          %179 = sbr.rel (%p177) target = $region28
        $region27: #{tpu_custom_call.1} parent=19 // pred_region
          %p180 = scmp.lt.s32.totalorder %s22, 1
          %s181 = scalar_select %p180, %s22, 1
          %s182 = smul.addr %s181, 5
          %s183 = smul.addr %s182, 8
          %s184 = scalar_lea.vmem %s3, %s183
        $region28: #{tpu_custom_call.1} parent=19 // pred_fallthru
          _
        // Predicated region
        $region29: #{tpu_custom_call.1} parent=19 // pred_check
          %p185 = pneg %p115
        $region30: #{tpu_custom_call.1} parent=19 // pred_check_branch
          %187 = sbr.rel (%p185) target = $region32
        $region31: #{tpu_custom_call.1} parent=19 // pred_region
          %p188 = scmp.lt.s32.totalorder %s22, 1
          %s189 = scalar_select %p188, %s22, 1
          %s190 = smul.addr %s189, 4
          %s191 = smul.addr %s190, 8
          %s192 = scalar_lea.vmem %s4, %s191
        $region32: #{tpu_custom_call.1} parent=19 // pred_fallthru
          _
      $region20: #{tpu_custom_call.1} parent=5 // pred_fallthru
        _
      %p193 = scmp.le.s32.totalorder 1, %s22
      %p194 = scmp.lt.s32.totalorder %s22, 3
      %p195 = pnand %p193, %p194
      %p196 = pneg %p195
      // Predicated region
      $region33: #{tpu_custom_call.1} parent=5 // pred_check
        _
      $region34: #{tpu_custom_call.1} parent=5 // pred_check_branch
        %198 = sbr.rel (%p195) target = $region36
      $region35: #{tpu_custom_call.1} parent=5 // pred_region
        %s199 = ssub.s32 %s22, 1
        %p200 = pneg %p43
        %p201 = pneg %p40
        %p202 = scmp.lt.s32.totalorder %s27, 1
        %s203 = scalar_select %p202, %s27, 1
        %s204 = smul.addr %s203, 2
        %s205 = smul.addr %s204, 8
        %s206 = scalar_lea.vmem %s2, %s205
        %p207 = pneg %p69
        %p208 = pneg %p66
        %p209 = scmp.lt.s32.totalorder %s27, 1
        %s210 = scalar_select %p209, %s27, 1
        %s211 = smul.addr %s210, 5
        %s212 = smul.addr %s211, 8
        %s213 = scalar_lea.vmem %s3, %s212
        %p214 = pneg %p95
        %p215 = pneg %p92
        %p216 = scmp.lt.s32.totalorder %s27, 1
        %s217 = scalar_select %p216, %s27, 1
        %s218 = smul.addr %s217, 4
        %s219 = smul.addr %s218, 8
        %s220 = scalar_lea.vmem %s4, %s219
        %p221 = pneg %p121
        %p222 = pneg %p118
        %p223 = pneg %p147
        %p224 = pneg %p144
        %s225 = sand.u32 %s134, 1
        %s226 = scalar_lea.sflag [#allocation5], %s225
        %s227 = sand.u32 %s134, 1
        %s228 = smul.addr %s227, 16
        %s229 = scalar_lea.vmem [#allocation4], %s228
        %p230 = scmp.lt.s32.totalorder %s27, 1
        %s231 = scalar_select %p230, %s27, 1
        %s232 = smul.addr %s231, 2
        %s233 = smul.addr %s232, 8
        %s234 = scalar_lea.vmem %s2, %s233
        %p235 = scmp.lt.s32.totalorder %s27, 1
        %s236 = scalar_select %p235, %s27, 1
        %s237 = smul.addr %s236, 5
        %s238 = smul.addr %s237, 8
        %s239 = scalar_lea.vmem %s3, %s238
        %p240 = scmp.lt.s32.totalorder %s27, 1
        %s241 = scalar_select %p240, %s27, 1
        %s242 = smul.addr %s241, 4
        %s243 = smul.addr %s242, 8
        %s244 = scalar_lea.vmem %s4, %s243
        %v246 = vld [vmem:[%s1] sm:$0xff]
        %v247 = vld [vmem:[%s1 + $0x8] sm:$0xff]
        %v248 = vld [vmem:[%s1 + $0x10] sm:$0xff]
        %v249 = vld [vmem:[%s1 + $0x18] sm:$0xff]
        %v250 = vld [vmem:[%s1 + $0x20] sm:$0xff]
        %v251 = vld [vmem:[%s1 + $0x28] sm:$0xff]
        %v252 = vld [vmem:[%s1 + $0x30] sm:$0xff]
        %v253 = vld [vmem:[%s1 + $0x38] sm:$0xff]
        %v254 = vld [vmem:[%s1 + $0x40] sm:$0xff]
        %v255 = vld [vmem:[%s1 + $0x48] sm:$0xff]
        %v256 = vld [vmem:[%s1 + $0x50] sm:$0xff]
        %v257 = vld [vmem:[%s1 + $0x58] sm:$0xff]
        %v258 = vld [vmem:[%s1 + $0x60] sm:$0x1]
        %v259 = vld [vmem:[%s1 + $0x61] sm:$0x1]
        %v260 = vld [vmem:[%s1 + $0x62] sm:$0x1]
        %v261 = vld [vmem:[%s239] sm:$0xff]
        %v262 = vld [vmem:[%s239 + $0x8] sm:$0xff]
        %v263 = vld [vmem:[%s239 + $0x10] sm:$0xff]
        %v264 = vld [vmem:[%s239 + $0x18] sm:$0xff]
        %v265 = vld [vmem:[%s239 + $0x20] sm:$0x1]
        %v266 = vld [vmem:[%s234] sm:$0xff]
        %v267 = vld [vmem:[%s234 + $0x8] sm:$0xff]
        %v268 = vpack.c.bf16 %v267, %v266
        %v269 = vpack.c.bf16 %v247, %v246
        %v270 = vpack.c.bf16 %v249, %v248
        %vm271 = vcmask 261120
        %v273 = vsel %vm271, %v268, 0
        %275 = vmatpush.bf16.msra.mxu0 0
        %276 = vmatpush.bf16.msra.mxu0 0
        %277 = vmatpush.bf16.msra.mxu0 0
        %278 = vmatpush.bf16.msra.mxu0 0
        %279 = vmatpush.bf16.msra.mxu0 0
        %280 = vmatpush.bf16.msra.mxu0 0
        %281 = vmatpush.bf16.msra.mxu0 %v270
        %282 = vmatpush.bf16.msra.mxu0 %v269
        %283 = vmatmul.bf16.gmra.mxu0 %v273
        %v284 = vpop.f32.mrf.mxu0
        %v285 = vadd.f32 0.0, %v284
        %v286 = vpop.f32.mrf.mxu0
        %v287 = vadd.f32 0.0, %v286
        %288 = vdwg.mxu0
        %v289 = vmul.f32 %v265, -2.0
        %v290 = vmul.f32 %v289, 1.442695
        %v291 = vpow.pop %v290
        %v292 = vpack.c.bf16 %v264, %v263
        %v293 = vpack.c.bf16 %v287, %v285
        %vm294 = vcmask 130048
        %v296 = vsel %vm294, %v292, 0
        %298 = vmatpush.bf16.msra.mxu0 0
        %299 = vmatpush.bf16.msra.mxu0 0
        %300 = vmatpush.bf16.msra.mxu0 0
        %301 = vmatpush.bf16.msra.mxu0 0
        %302 = vmatpush.bf16.msra.mxu0 0
        %303 = vmatpush.bf16.msra.mxu0 0
        %304 = vmatpush.bf16.msra.mxu0 0
        %305 = vmatpush.bf16.msra.mxu0 %v293
        %306 = vmatmul.bf16.gmra.mxu0 %v296
        %v307 = vpop.f32.mrf.mxu0
        %v308 = vadd.f32 0.0, %v307
        %v309 = vpop.f32.mrf.mxu0
        %v310 = vadd.f32 0.0, %v309
        %311 = vdwg.mxu0
        %v312 = vperm.slane %v291, 0
        %v313 = vmul.f32 %v261, %v312
        %v314 = vmul.f32 %v262, %v312
        %v315 = vpack.c.bf16 %v314, %v313
        %v316 = vpack.c.bf16 %v310, %v308
        %v318 = vsel %vm294, %v315, 0
        %320 = vmatpush.bf16.msra.mxu0 0
        %321 = vmatpush.bf16.msra.mxu0 0
        %322 = vmatpush.bf16.msra.mxu0 0
        %323 = vmatpush.bf16.msra.mxu0 0
        %324 = vmatpush.bf16.msra.mxu0 0
        %325 = vmatpush.bf16.msra.mxu0 0
        %326 = vmatpush.bf16.msra.mxu0 0
        %327 = vmatpush.bf16.msra.mxu0 %v316
        %328 = vmatmul.bf16.gmra.mxu0 %v318
        %v329 = vpop.f32.mrf.mxu0
        %v330 = vadd.f32 0.0, %v329
        %v331 = vpop.f32.mrf.mxu0
        %v332 = vadd.f32 0.0, %v331
        %333 = vdwg.mxu0
        %336 = vrot.lane.b32.xlu0 %v330, 32
        %v337 = vpop.permute.xlu0 %336
        %338 = vrot.lane.b32.xlu0 %v332, 32
        %v339 = vpop.permute.xlu0 %338
        %v342 = vsel %vm271, %v285, %v337
        %v343 = vsel %vm271, %v287, %v339
        %v344 = vpack.c.bf16 %v343, %v342
        %v345 = vpack.c.bf16 %v251, %v250
        %v346 = vpack.c.bf16 %v253, %v252
        %v347 = vpack.c.bf16 %v255, %v254
        %v348 = vpack.c.bf16 %v257, %v256
        %v349 = vperm.slane %v260, 0
        %vm350 = vcmask 523264
        %v352 = vsel %vm350, %v344, 0
        %354 = vmatpush.bf16.msra.mxu0 0
        %355 = vmatpush.bf16.msra.mxu0 0
        %356 = vmatpush.bf16.msra.mxu0 0
        %357 = vmatpush.bf16.msra.mxu0 0
        %358 = vmatpush.bf16.msra.mxu0 %v348
        %359 = vmatpush.bf16.msra.mxu0 %v347
        %360 = vmatpush.bf16.msra.mxu0 %v346
        %361 = vmatpush.bf16.msra.mxu0 %v345
        %362 = vmatmul.bf16.gmra.mxu0 %v352
        %v363 = vpop.f32.mrf.mxu0
        %v364 = vadd.f32 %v349, %v363
        %v365 = vpop.f32.mrf.mxu0
        %v366 = vadd.f32 %v349, %v365
        %367 = vdwg.mxu0
        %v368 = vpack.c.bf16 %v258, %v258
        %v369 = vpack.c.bf16 %v366, %v364
        %v371 = vsel %vm271, %v368, 0
        %v374 = vsel %vm271, %v369, 0
        %376 = vmatpush.bf16.xpose.msra.mxu0 0
        %377 = vmatpush.bf16.xpose.msra.mxu0 0
        %378 = vmatpush.bf16.xpose.msra.mxu0 0
        %379 = vmatpush.bf16.xpose.msra.mxu0 0
        %380 = vmatpush.bf16.xpose.msra.mxu0 0
        %381 = vmatpush.bf16.xpose.msra.mxu0 0
        %382 = vmatpush.bf16.xpose.msra.mxu0 0
        %383 = vmatpush.bf16.xpose.msra.mxu0 %v374
        %384 = vmatmul.bf16.gmra.mxu0 %v371
        %v385 = vpop.f32.mrf.mxu0
        %v386 = vadd.f32 0.0, %v385
        %v387 = vpop.f32.mrf.mxu0
        %388 = vdwg.mxu0
        %v389 = vperm.slane %v259, 0
        %v390 = vmul.f32 %v364, %v389
        %v391 = vmul.f32 %v366, %v389
        %v392 = vsel %vm271, %v390, 0.0
        %393 = vadd.xlane.f32.xlu0 %v392
        %v394 = vpop.xlane.xlu0 %393
        %v395 = vsel %vm271, %v391, 0.0
        %396 = vadd.xlane.f32.xlu0 %v395
        %v397 = vpop.xlane.xlu0 %396
        %v398 = vld [vmem:[%s244] sm:$0xff]
        %v399 = vld [vmem:[%s244 + $0x8] sm:$0xff]
        %s400 = sld [smem:[#allocation3]]
        %v401 = vstv %s400
        %v402 = vmul.f32 %v398, %v401
        %v403 = vmul.f32 %v399, %v401
        %s404 = scalar_lea.vmem %s244, 16
        %v405 = vld [vmem:[%s404] sm:$0xff]
        %v406 = vld [vmem:[%s404 + $0x8] sm:$0xff]
        %s407 = sld [smem:[#allocation3 + $0x1]]
        %v408 = vstv %s407
        %v409 = vmul.f32 %v405, %v408
        %v410 = vmul.f32 %v406, %v408
        %v411 = vadd.f32 %v402, %v409
        %v412 = vadd.f32 %v403, %v410
        %v413 = vperm.slane %v386, 0
        %v414 = vadd.f32 %v413, %v394
        %v415 = vadd.f32 %v413, %v397
        %v416 = vadd.f32 %v414, %v411
        %v417 = vadd.f32 %v415, %v412
        %vm418 = vcmp.gt.f32.partialorder %v416, 0.0
        %vm419 = vcmp.gt.f32.partialorder %v417, 0.0
        %v420 = vmul.f32 %v416, 0.01
        %v421 = vmul.f32 %v417, 0.01
        %v422 = vsel %vm418, %v416, %v420
        %v423 = vsel %vm419, %v417, %v421
        %v424 = vsel %vm294, %v422, -inf
        %425 = vmax.xlane.f32.xlu0 %v424
        %v426 = vpop.xlane.xlu0 %425
        %v427 = vsel %vm294, %v423, -inf
        %428 = vmax.xlane.f32.xlu0 %v427
        %v429 = vpop.xlane.xlu0 %428
        %v430 = vsub.f32 %v422, %v426
        %v431 = vsub.f32 %v423, %v429
        %v432 = vmul.f32 %v430, 1.442695
        %v433 = vpow.pop %v432
        %v434 = vmul.f32 %v431, 1.442695
        %v435 = vpow.pop %v434
        %v436 = vsel %vm294, %v433, 0.0
        %437 = vadd.xlane.f32.xlu0 %v436
        %v438 = vpop.xlane.xlu0 %437
        %v439 = vsel %vm294, %v435, 0.0
        %440 = vadd.xlane.f32.xlu0 %v439
        %v441 = vpop.xlane.xlu0 %440
        %v442 = vrcp.pop %v438
        %v443 = vmul.f32 %v438, %v442
        %v444 = vsub.f32 1.0, %v443
        %v445 = vmul.f32 %v442, %v444
        %v446 = vadd.f32 %v442, %v445
        %vm447 = vweird.f32 %v438
        %vm448 = vweird.f32 %v442
        %vm449 = vmor %vm447, %vm448
        %v450 = vsel %vm449, %v442, %v446
        %v451 = vand.u32 2147483647, %v438
        %vm452 = vcmp.eq.f32.partialorder %v451, 8.507059e+37
        %v453 = vand.u32 %v438, 2147483648
        %v454 = vor.u32 1.1754944e-38, %v453
        %v455 = vsel %vm452, %v454, %v450
        %v456 = vmul.f32 %v433, %v455
        %v457 = vrcp.pop %v441
        %v458 = vmul.f32 %v441, %v457
        %v459 = vsub.f32 1.0, %v458
        %v460 = vmul.f32 %v457, %v459
        %v461 = vadd.f32 %v457, %v460
        %vm462 = vweird.f32 %v441
        %vm463 = vweird.f32 %v457
        %vm464 = vmor %vm462, %vm463
        %v465 = vsel %vm464, %v457, %v461
        %v466 = vand.u32 2147483647, %v441
        %vm467 = vcmp.eq.f32.partialorder %v466, 8.507059e+37
        %v468 = vand.u32 %v441, 2147483648
        %v469 = vor.u32 1.1754944e-38, %v468
        %v470 = vsel %vm467, %v469, %v465
        %v471 = vmul.f32 %v435, %v470
        %v472 = vpack.c.bf16 %v471, %v456
        %v473 = vmul.f32 %v456, %v398
        %v474 = vmul.f32 %v471, %v399
        %v475 = vsel %vm294, %v473, 0.0
        %476 = vadd.xlane.f32.xlu0 %v475
        %v477 = vpop.xlane.xlu0 %476
        %v478 = vsel %vm294, %v474, 0.0
        %479 = vadd.xlane.f32.xlu0 %v478
        %v480 = vpop.xlane.xlu0 %479
        %v481 = vld [vmem:[%s1 + $0x63] sm:$0x1]
        %v482 = vperm.slane %v481, 0
        %v483 = vmul.f32 %v477, %v482
        %v484 = vmul.f32 %v480, %v482
        %v486 = vsel %vm294, %v472, 0
        %488 = vmatpush.bf16.msra.mxu0 0
        %489 = vmatpush.bf16.msra.mxu0 0
        %490 = vmatpush.bf16.msra.mxu0 0
        %491 = vmatpush.bf16.msra.mxu0 0
        %492 = vmatpush.bf16.msra.mxu0 0
        %493 = vmatpush.bf16.msra.mxu0 0
        %494 = vmatpush.bf16.msra.mxu0 0
        %495 = vmatpush.bf16.msra.mxu0 %v369
        %496 = vmatmul.bf16.gmra.mxu0 %v486
        %v497 = vpop.f32.mrf.mxu0
        %v498 = vadd.f32 %v483, %v497
        %v499 = vpop.f32.mrf.mxu0
        %v500 = vadd.f32 %v484, %v499
        %501 = vdwg.mxu0
        %v502 = vmul.f32 %v456, %v405
        %v503 = vmul.f32 %v471, %v406
        %v504 = vsel %vm294, %v502, 0.0
        %505 = vadd.xlane.f32.xlu0 %v504
        %v506 = vpop.xlane.xlu0 %505
        %v507 = vsel %vm294, %v503, 0.0
        %508 = vadd.xlane.f32.xlu0 %v507
        %v509 = vpop.xlane.xlu0 %508
        %v510 = vld [vmem:[%s1 + $0x64] sm:$0x1]
        %v511 = vperm.slane %v510, 0
        %v512 = vmul.f32 %v506, %v511
        %v513 = vmul.f32 %v509, %v511
        %v514 = vadd.f32 %v498, %v512
        %v515 = vadd.f32 %v500, %v513
        %516 = vst.msk [vmem:[%s229] sm:$0xff] %vm271, %v514
        %517 = vst.msk [vmem:[%s229 + $0x8] sm:$0xff] %vm271, %v515
        %s518 = sand.u32 %s134, 1
        %s519 = scalar_lea.sflag [#allocation5], %s518
        %s520 = sand.u32 %s134, 1
        %s521 = smul.addr %s520, 16
        %s522 = scalar_lea.vmem [#allocation4], %s521
        // Predicated region
        $region37: #{tpu_custom_call.1} parent=35 // pred_check
          %p523 = pneg %p144
        $region38: #{tpu_custom_call.1} parent=35 // pred_check_branch
          %525 = sbr.rel (%p523) target = $region40
        $region39: #{tpu_custom_call.1} parent=35 // pred_region
          %527 = vsyncadd %s519, 0
          %s528 = smul.addr %s27, 2
          %s529 = smul.addr %s528, 8
          %s530 = scalar_lea.hbm %s5, %s529
          %s531 = sshll.u32 %s522, 4
          %s532 = int_to_ptr.vmem [resolvable:$true] %s531
          %s533 = sshll.u32 %s530, 4
          %s534 = int_to_ptr.hbm [resolvable:$true] %s533
          %539 = dma.vmem_to_hbm [thread:$0]  %s532, 256, %s534, %s519, 128, 128, 8
        $region40: #{tpu_custom_call.1} parent=35 // pred_fallthru
          _
      $region36: #{tpu_custom_call.1} parent=5 // pred_fallthru
        _
      %p540 = scmp.le.s32.totalorder 2, %s22
      // Predicated region
      $region41: #{tpu_custom_call.1} parent=5 // pred_check
        %p541 = pneg %p540
      $region42: #{tpu_custom_call.1} parent=5 // pred_check_branch
        %543 = sbr.rel (%p541) target = $region44
      $region43: #{tpu_custom_call.1} parent=5 // pred_region
        %s544 = ssub.s32 %s22, 2
        // Predicated region
        $region45: #{tpu_custom_call.1} parent=43 // pred_check
          %p545 = pneg %p150
        $region46: #{tpu_custom_call.1} parent=43 // pred_check_branch
          %547 = sbr.rel (%p545) target = $region48
        $region47: #{tpu_custom_call.1} parent=43 // pred_region
          %s548 = sand.u32 %s135, 1
          %s549 = scalar_lea.sflag [#allocation5], %s548
          %s550 = sand.u32 %s135, 1
          %s551 = smul.addr %s550, 16
          %s552 = scalar_lea.vmem [#allocation4], %s551
          %554 = dma.done %s549, 256
        $region48: #{tpu_custom_call.1} parent=43 // pred_fallthru
          _
      $region44: #{tpu_custom_call.1} parent=5 // pred_fallthru
        _
    $region6: #{tpu_custom_call.1} parent=1 // loop_footer
      %s26 = sadd.s32 1, %s22
    $region7: #{tpu_custom_call.1} parent=1 // loop_footer_branch
      %21 = sbr.rel target = $region3
    $region8: #{tpu_custom_call.1} parent=1 // loop_exit
      _
    %555 = vsyncpa [#allocation5], 1
    %s556 = scalar_lea.sflag [#allocation5], 1
    %557 = vsyncpa %s556, 1

</llo_original>
